<compile_context>
chip_gen: v5e
topology: v5e:2x2
jax: 0.10.0
libtpu: 0.0.40
codegen_flags: <defaults>
</compile_context>

<pallas_src>
import functools

import jax
import jax.numpy as jnp
from jax.experimental import pallas as pl
from jax.experimental.pallas import tpu as pltpu


def _round_up(v, m):
    return ((v + m - 1) // m) * m


def _make_meta_kernel(num_rest: int):
    """Build a kernel for a Meta net with `num_rest` extra hidden layers."""

    def kernel(x_ref, w1_ref, b1_ref, *rest):
        # rest layout:
        #   [wr_0, br_0, ..., wr_{num_rest-1}, br_{num_rest-1}, wo, bo, o_ref]
        wo_ref = rest[2 * num_rest]
        bo_ref = rest[2 * num_rest + 1]          # (1,1) scalar in SMEM
        o_ref = rest[2 * num_rest + 2]

        x = x_ref[...]                           # (1, bn), lane-dense batch

        # First hidden layer: Linear(1, H) + ReLU.
        # K=1 matmul -> pure VPU outer product: (H,1) * (1,bn) -> (H,bn), f32.
        h = jnp.maximum(w1_ref[...] * x + b1_ref[...], 0.0)

        # Remaining hidden layers: Linear(H, H) + ReLU on the MXU.
        # Weights arrive pre-cast to bf16; activations cast to bf16 for the
        # MXU, accumulate in f32, bias-add + ReLU in f32.
        for i in range(num_rest):
            w = rest[2 * i][...]                 # (H, H) bf16
            b = rest[2 * i + 1][...]             # (H, 1) f32
            h = jnp.dot(w, h.astype(jnp.bfloat16),
                        preferred_element_type=jnp.float32)
            h = jnp.maximum(h + b, 0.0)

        # Output layer: Linear(H, 1) + sigmoid.
        # N=1 matmul -> VPU multiply + sublane (XLU) reduction over H.
        z = jnp.sum(h * wo_ref[...], axis=0, keepdims=True) + bo_ref[0, 0]
        o_ref[...] = jax.nn.sigmoid(z).astype(o_ref.dtype)

    return kernel


def _vmem_budget_bytes(bn, hid, num_rest):
    """Rough scoped-VMEM budget for one grid step (with headroom)."""
    io_dbl = 2 * 2 * bn * 4                       # (1,bn) in + out, double-buffered
    inter = (num_rest + 3) * hid * bn * 4         # live (H,bn) intermediates (f32+bf16)
    weights = 2 * (num_rest * hid * hid + 4 * hid + 1) * 4
    budget = io_dbl + inter + weights + (4 << 20)  # +4 MiB slack
    # Never go below the default scoped limit; never ask past v7x's 64 MiB.
    return int(min(max(budget, 32 << 20), 64 << 20))


@functools.partial(jax.jit, static_argnames=("block_n",))
def meta_forward(x, params, *, block_n=16384):
    """Run the Meta forward pass.

    x:      (N, 1) float32 (any N; padded internally).
    params: dict with w1 (H,1), b1 (H,1), rest_w tuple of (H,H),
            rest_b tuple of (H,1), wo (H,1), bo (1,1).
    Returns (N, 1) float32.
    """
    n = x.shape[0]
    hid = params["w1"].shape[0]
    num_rest = len(params["rest_w"])

    # Lane-dense tiling: batch on lanes, tile width a multiple of 128.
    # Keep the grid at >= 2 steps for non-tiny batches so the "parallel"
    # axis can shard across v7x's two TensorCores.
    n128 = _round_up(n, 128)
    bn = min(block_n, max(128, _round_up(pl.cdiv(n128, 2), 128)))
    n_pad = _round_up(n, bn)
    grid = (n_pad // bn,)

    # (N, 1) -> (1, N) is a free reshape (contiguous); only pad the tail
    # when needed (no full scatter copy of x in HBM).
    xt = x.reshape(1, n).astype(jnp.float32)
    if n_pad != n:
        xt = jnp.pad(xt, ((0, 0), (0, n_pad - n)))

    x_spec = pl.BlockSpec((1, bn), lambda i: (0, i))
    out_spec = pl.BlockSpec((1, bn), lambda i: (0, i))

    def full_spec(shape):
        return pl.BlockSpec(shape, lambda i: tuple(0 for _ in shape))

    in_specs = [x_spec, full_spec((hid, 1)), full_spec((hid, 1))]
    args = [xt, params["w1"], params["b1"]]
    for wr, br in zip(params["rest_w"], params["rest_b"]):
        in_specs += [full_spec((hid, hid)), full_spec((hid, 1))]
        # Pre-cast the MXU weights to bf16 (grid-invariant; halves weight DMA).
        args += [wr.astype(jnp.bfloat16), br]
    in_specs += [
        full_spec((hid, 1)),
        pl.BlockSpec(memory_space=pltpu.MemorySpace.SMEM),  # bo: true scalar
    ]
    args += [params["wo"], params["bo"]]

    kernel = _make_meta_kernel(num_rest)

    yt = pl.pallas_call(
        kernel,
        out_shape=jax.ShapeDtypeStruct((1, n_pad), jnp.float32),
        grid_spec=pltpu.PrefetchScalarGridSpec(
            num_scalar_prefetch=0,
            grid=grid,
            in_specs=in_specs,
            out_specs=out_spec,
        ),
        compiler_params=pltpu.CompilerParams(
            dimension_semantics=("parallel",),
            vmem_limit_bytes=_vmem_budget_bytes(bn, hid, num_rest),
        ),
    )(*args)

    return yt[0, :n].reshape(n, 1)


def init_meta_params(key, hidden_size=32, num_layers=2):
    """Deterministic synthetic parameters (shapes match the torch module)."""
    ks = jax.random.split(key, 2 * (num_layers + 1))
    scale = 0.5

    # first_hidden_layer: Linear(1, H) -> weight (H, 1), bias (H, 1)
    w1 = scale * jax.random.normal(ks[0], (hidden_size, 1), jnp.float32)
    b1 = scale * jax.random.normal(ks[1], (hidden_size, 1), jnp.float32)

    rest_w, rest_b = [], []
    for l in range(num_layers - 1):
        rest_w.append(
            scale
            * jax.random.normal(
                ks[2 + 2 * l], (hidden_size, hidden_size), jnp.float32
            )
        )
        rest_b.append(
            scale
            * jax.random.normal(ks[3 + 2 * l], (hidden_size, 1), jnp.float32)
        )

    # output_layer: Linear(H, 1) -> weight stored transposed as (H, 1)
    wo = scale * jax.random.normal(ks[-2], (hidden_size, 1), jnp.float32)
    bo = scale * jax.random.normal(ks[-1], (1, 1), jnp.float32)

    return {
        "w1": w1,
        "b1": b1,
        "rest_w": tuple(rest_w),
        "rest_b": tuple(rest_b),
        "wo": wo,
        "bo": bo,
    }


def meta_reference(x, params):
    """Pure-JAX reference of the torch forward pass (x: (N,1)), full f32."""
    h = jnp.maximum(x @ params["w1"].T + params["b1"].T, 0.0)   # (N, H)
    for wr, br in zip(params["rest_w"], params["rest_b"]):
        h = jnp.maximum(h @ wr.T + br.T, 0.0)
    return jax.nn.sigmoid(h @ params["wo"] + params["bo"])       # (N, 1)


if __name__ == "__main__":
    key = jax.random.PRNGKey(0)
    k_x, k_p = jax.random.split(key)

    N, HIDDEN, NUM_LAYERS = 16, 32, 2
    x = jax.random.normal(k_x, (N, 1), jnp.float32)
    params = init_meta_params(k_p, hidden_size=HIDDEN, num_layers=NUM_LAYERS)

    # Tolerance loosened vs f32 reference because hidden matmuls run in bf16
    # (f32 accumulation); error through sigmoid stays well under 1e-2.
    out = meta_forward(x, params)
    out = jax.block_until_ready(out)
    ref = meta_reference(x, params)
    assert out.shape == (N, 1)
    assert jnp.allclose(out, ref, atol=1e-2, rtol=1e-2), (out, ref)

    # Ragged batch, default large-tile path (auto >=2-step grid + padding).
    N2 = 300
    x2 = jax.random.normal(jax.random.PRNGKey(3), (N2, 1), jnp.float32)
    out2 = jax.block_until_ready(meta_forward(x2, params))
    ref2 = meta_reference(x2, params)
    assert out2.shape == (N2, 1)
    assert jnp.allclose(out2, ref2, atol=1e-2, rtol=1e-2)

    # Explicit small tile (multi-tile grid) still works.
    out3 = jax.block_until_ready(meta_forward(x2, params, block_n=128))
    assert jnp.allclose(out3, ref2, atol=1e-2, rtol=1e-2)

    print("KERNEL_OK")
</pallas_src>

<mosaic_0001>
module attributes {stable_mosaic.version = 11 : i64} {
  func.func @kernel(%arg0: i32, %arg1: memref<1x128xf32, #tpu.memory_space<vmem>>, %arg2: memref<32x1xf32, #tpu.memory_space<vmem>>, %arg3: memref<32x1xf32, #tpu.memory_space<vmem>>, %arg4: memref<32x32xbf16, #tpu.memory_space<vmem>>, %arg5: memref<32x1xf32, #tpu.memory_space<vmem>>, %arg6: memref<32x1xf32, #tpu.memory_space<vmem>>, %arg7: memref<1x1xf32, #tpu.memory_space<smem>>, %arg8: memref<1x128xf32, #tpu.memory_space<vmem>>) attributes {dimension_semantics = [#tpu.dimension_semantics<parallel>], iteration_bounds = array<i64: 1>, scalar_prefetch = 0 : i64, scratch_operands = 0 : i64, tpu.core_type = #tpu.core_type<tc>, window_params = [{transform_indices = @transform_0, window_bounds = array<i64: 1, 128>}, {pipeline_mode = #tpu.pipeline_mode<synchronous>, transform_indices = @transform_1, window_bounds = array<i64: 32, 1>}, {pipeline_mode = #tpu.pipeline_mode<synchronous>, transform_indices = @transform_2, window_bounds = array<i64: 32, 1>}, {pipeline_mode = #tpu.pipeline_mode<synchronous>, transform_indices = @transform_3, window_bounds = array<i64: 32, 32>}, {pipeline_mode = #tpu.pipeline_mode<synchronous>, transform_indices = @transform_4, window_bounds = array<i64: 32, 1>}, {pipeline_mode = #tpu.pipeline_mode<synchronous>, transform_indices = @transform_5, window_bounds = array<i64: 32, 1>}, {transform_indices = @transform_6, window_bounds = array<i64: 1, 1>}, {transform_indices = @transform_7, window_bounds = array<i64: 1, 128>}]} {
    %c0 = arith.constant 0 : index
    %c0_0 = arith.constant 0 : index
    %0 = vector.load %arg1[%c0, %c0_0] : memref<1x128xf32, #tpu.memory_space<vmem>>, vector<1x128xf32>
    %c0_1 = arith.constant 0 : index
    %c0_2 = arith.constant 0 : index
    %1 = vector.load %arg2[%c0_1, %c0_2] : memref<32x1xf32, #tpu.memory_space<vmem>>, vector<32x1xf32>
    %2 = vector.broadcast %1 : vector<32x1xf32> to vector<32x128xf32>
    %3 = vector.broadcast %0 : vector<1x128xf32> to vector<32x128xf32>
    %4 = arith.mulf %2, %3 : vector<32x128xf32>
    %c0_3 = arith.constant 0 : index
    %c0_4 = arith.constant 0 : index
    %5 = vector.load %arg3[%c0_3, %c0_4] : memref<32x1xf32, #tpu.memory_space<vmem>>, vector<32x1xf32>
    %6 = vector.broadcast %5 : vector<32x1xf32> to vector<32x128xf32>
    %7 = arith.addf %4, %6 : vector<32x128xf32>
    %cst = arith.constant 0.000000e+00 : f32
    %8 = vector.broadcast %cst : f32 to vector<32x128xf32>
    %9 = arith.maximumf %7, %8 : vector<32x128xf32>
    %c0_5 = arith.constant 0 : index
    %c0_6 = arith.constant 0 : index
    %10 = vector.load %arg4[%c0_5, %c0_6] : memref<32x32xbf16, #tpu.memory_space<vmem>>, vector<32x32xbf16>
    %c0_7 = arith.constant 0 : index
    %c0_8 = arith.constant 0 : index
    %11 = vector.load %arg5[%c0_7, %c0_8] : memref<32x1xf32, #tpu.memory_space<vmem>>, vector<32x1xf32>
    %12 = arith.truncf %9 : vector<32x128xf32> to vector<32x128xbf16>
    %cst_9 = arith.constant dense<0.000000e+00> : vector<32x128xf32>
    %13 = tpu.matmul %10, %12, %cst_9 {dimension_numbers = #tpu.dot_dimension_numbers<[1], [0], [0], [1], [0, 0, 1, 1], [], []>} : vector<32x32xbf16>, vector<32x128xbf16>, vector<32x128xf32> -> vector<32x128xf32>
    %14 = vector.broadcast %11 : vector<32x1xf32> to vector<32x128xf32>
    %15 = arith.addf %13, %14 : vector<32x128xf32>
    %cst_10 = arith.constant 0.000000e+00 : f32
    %16 = vector.broadcast %cst_10 : f32 to vector<32x128xf32>
    %17 = arith.maximumf %15, %16 : vector<32x128xf32>
    %c0_11 = arith.constant 0 : index
    %c0_12 = arith.constant 0 : index
    %18 = vector.load %arg6[%c0_11, %c0_12] : memref<32x1xf32, #tpu.memory_space<vmem>>, vector<32x1xf32>
    %19 = vector.broadcast %18 : vector<32x1xf32> to vector<32x128xf32>
    %20 = arith.mulf %17, %19 : vector<32x128xf32>
    %cst_13 = arith.constant dense<0.000000e+00> : vector<128xf32>
    %21 = vector.multi_reduction <add>, %20, %cst_13 [0] : vector<32x128xf32> to vector<128xf32>
    %22 = vector.shape_cast %21 : vector<128xf32> to vector<1x128xf32>
    %c0_14 = arith.constant 0 : index
    %c0_15 = arith.constant 0 : index
    %23 = memref.load %arg7[%c0_14, %c0_15] : memref<1x1xf32, #tpu.memory_space<smem>>
    %24 = vector.broadcast %23 : f32 to vector<1x128xf32>
    %25 = arith.addf %22, %24 : vector<1x128xf32>
    %26 = arith.negf %25 : vector<1x128xf32>
    %27 = math.exp %26 : vector<1x128xf32>
    %cst_16 = arith.constant 1.000000e+00 : f32
    %28 = vector.broadcast %cst_16 : f32 to vector<1x128xf32>
    %29 = arith.addf %28, %27 : vector<1x128xf32>
    %30 = arith.divf %28, %29 : vector<1x128xf32>
    %c0_17 = arith.constant 0 : index
    %c0_18 = arith.constant 0 : index
    %31 = vector.load %arg8[%c0_17, %c0_18] : memref<1x128xf32, #tpu.memory_space<vmem>>, vector<1x128xf32>
    tpu.vector_store %arg8[%c0_17, %c0_18], %30 {strides = array<i32>} : memref<1x128xf32, #tpu.memory_space<vmem>>, vector<1x128xf32>,
    return
  }
  func.func @transform_0(%arg0: i32) -> (i32, i32) {
    %c0_i32 = arith.constant 0 : i32
    %c0_i32_0 = arith.constant 0 : i32
    return %c0_i32, %arg0 : i32, i32
  }
  func.func @transform_1(%arg0: i32) -> (i32, i32) {
    %c0_i32 = arith.constant 0 : i32
    %c0_i32_0 = arith.constant 0 : i32
    %c0_i32_1 = arith.constant 0 : i32
    return %c0_i32, %c0_i32_0 : i32, i32
  }
  func.func @transform_2(%arg0: i32) -> (i32, i32) {
    %c0_i32 = arith.constant 0 : i32
    %c0_i32_0 = arith.constant 0 : i32
    %c0_i32_1 = arith.constant 0 : i32
    return %c0_i32, %c0_i32_0 : i32, i32
  }
  func.func @transform_3(%arg0: i32) -> (i32, i32) {
    %c0_i32 = arith.constant 0 : i32
    %c0_i32_0 = arith.constant 0 : i32
    %c0_i32_1 = arith.constant 0 : i32
    return %c0_i32, %c0_i32_0 : i32, i32
  }
  func.func @transform_4(%arg0: i32) -> (i32, i32) {
    %c0_i32 = arith.constant 0 : i32
    %c0_i32_0 = arith.constant 0 : i32
    %c0_i32_1 = arith.constant 0 : i32
    return %c0_i32, %c0_i32_0 : i32, i32
  }
  func.func @transform_5(%arg0: i32) -> (i32, i32) {
    %c0_i32 = arith.constant 0 : i32
    %c0_i32_0 = arith.constant 0 : i32
    %c0_i32_1 = arith.constant 0 : i32
    return %c0_i32, %c0_i32_0 : i32, i32
  }
  func.func @transform_6(%arg0: i32) -> (i32, i32) {
    %c0_i32 = arith.constant 0 : i32
    %c0_i32_0 = arith.constant 0 : i32
    %c0_i32_1 = arith.constant 0 : i32
    return %c0_i32, %c0_i32_0 : i32, i32
  }
  func.func @transform_7(%arg0: i32) -> (i32, i32) {
    %c0_i32 = arith.constant 0 : i32
    %c0_i32_0 = arith.constant 0 : i32
    return %c0_i32, %arg0 : i32, i32
  }
}

</mosaic_0001>

<llo_original>
// kernel: meta_forward.1
$region0: #{meta_forward.1}
  #allocation0 [shape = 'u32[]', space=smem, size = 0x4, offset = 0x4, fixed_abs, tag = 'smem constant byte address 0x4 - core index']
  #allocation1 [shape = 'u32[72,128]{1,0:T(1,128)}', space=vmem, size = 0x9000, scoped, tag = 'internal scratch']
  #allocation2 [shape = 'f32[1,1]{1,0:T(1,128)S(6)}', space=smem, size = 0x200, scoped, tag = 'scoped memory for meta_forward.1']
  %s0 = inlined_call_operand.vmem [shape: f32[1,128], index: 0, kind: input, shape index: {}]
  %s1 = inlined_call_operand.vmem [shape: f32[32,1], index: 1, kind: input, shape index: {}]
  %s2 = inlined_call_operand.vmem [shape: f32[32,1], index: 2, kind: input, shape index: {}]
  %s3 = inlined_call_operand.vmem [shape: bf16[32,32], index: 3, kind: input, shape index: {}]
  %s4 = inlined_call_operand.vmem [shape: f32[32,1], index: 4, kind: input, shape index: {}]
  %s5 = inlined_call_operand.vmem [shape: f32[32,1], index: 5, kind: input, shape index: {}]
  %s6 = inlined_call_operand.<no memory space> [shape: f32[1,1], index: 6, kind: input, shape index: {}]
  %s7 = inlined_call_operand.vmem [shape: f32[1,128], index: 7, kind: output, shape index: {}]
  %s8 = sld [smem:[#allocation0]]
  $region38: #{meta_forward.1} parent=0
    _
  %s10 = ssub.s32 1, %s8
  %s11 = scalar_select 0, %s10, %s8
  %12 = sst [smem:[#allocation2]] %s6
  // Predicated region
  $region2: #{meta_forward.1} parent=0 // pred_check
    _
  $region3: #{meta_forward.1} parent=0 // pred_check_branch
    %14 = sbr.rel (0) target = $region5
  $region4: #{meta_forward.1} parent=0 // pred_region
    _
  $region5: #{meta_forward.1} parent=0 // pred_fallthru
    _
  // Predicated region
  $region6: #{meta_forward.1} parent=0 // pred_check
    _
  $region7: #{meta_forward.1} parent=0 // pred_check_branch
    %16 = sbr.rel (0) target = $region9
  $region8: #{meta_forward.1} parent=0 // pred_region
    _
  $region9: #{meta_forward.1} parent=0 // pred_fallthru
    _
  // Predicated region
  $region10: #{meta_forward.1} parent=0 // pred_check
    _
  $region11: #{meta_forward.1} parent=0 // pred_check_branch
    %18 = sbr.rel (0) target = $region13
  $region12: #{meta_forward.1} parent=0 // pred_region
    _
  $region13: #{meta_forward.1} parent=0 // pred_fallthru
    _
  // Predicated region
  $region14: #{meta_forward.1} parent=0 // pred_check
    _
  $region15: #{meta_forward.1} parent=0 // pred_check_branch
    %20 = sbr.rel (0) target = $region17
  $region16: #{meta_forward.1} parent=0 // pred_region
    _
  $region17: #{meta_forward.1} parent=0 // pred_fallthru
    _
  // Predicated region
  $region18: #{meta_forward.1} parent=0 // pred_check
    _
  $region19: #{meta_forward.1} parent=0 // pred_check_branch
    %22 = sbr.rel (0) target = $region21
  $region20: #{meta_forward.1} parent=0 // pred_region
    _
  $region21: #{meta_forward.1} parent=0 // pred_fallthru
    _
  // Predicated region
  $region22: #{meta_forward.1} parent=0 // pred_check
    _
  $region23: #{meta_forward.1} parent=0 // pred_check_branch
    %24 = sbr.rel (0) target = $region25
  $region24: #{meta_forward.1} parent=0 // pred_region
    _
  $region25: #{meta_forward.1} parent=0 // pred_fallthru
    _
  // Predicated region
  $region26: #{meta_forward.1} parent=0 // pred_check
    _
  $region27: #{meta_forward.1} parent=0 // pred_check_branch
    %26 = sbr.rel (0) target = $region29
  $region28: #{meta_forward.1} parent=0 // pred_region
    _
  $region29: #{meta_forward.1} parent=0 // pred_fallthru
    _
  %v28 = vld [vmem:[%s0] sm:$0x1]
  %v29 = vld [vmem:[%s1] sm:$0xff]
  %v30 = vld [vmem:[%s1 + $0x8] sm:$0xff]
  %v31 = vld [vmem:[%s1 + $0x10] sm:$0xff]
  %v32 = vld [vmem:[%s1 + $0x18] sm:$0xff]
  %34 = vset.pattern.permute.xlu0 0
  %35 = vperm.xlu0 %34, %v29
  %v36 = vpop.permute.xlu0 %35
  %39 = vset.pattern.permute.xlu0 0
  %40 = vperm.xlu0 %39, %v30
  %v41 = vpop.permute.xlu0 %40
  %44 = vset.pattern.permute.xlu0 0
  %45 = vperm.xlu0 %44, %v31
  %v46 = vpop.permute.xlu0 %45
  %49 = vset.pattern.permute.xlu0 0
  %50 = vperm.xlu0 %49, %v32
  %v51 = vpop.permute.xlu0 %50
  %v54 = vperm.slane %v28, 0
  %v56 = vmul.f32 %v36, %v54
  %v57 = vmul.f32 %v41, %v54
  %v58 = vmul.f32 %v46, %v54
  %v59 = vmul.f32 %v51, %v54
  %v60 = vld [vmem:[%s2] sm:$0xff]
  %v61 = vld [vmem:[%s2 + $0x8] sm:$0xff]
  %v62 = vld [vmem:[%s2 + $0x10] sm:$0xff]
  %v63 = vld [vmem:[%s2 + $0x18] sm:$0xff]
  %65 = vset.pattern.permute.xlu0 0
  %66 = vperm.xlu0 %65, %v60
  %v67 = vpop.permute.xlu0 %66
  %70 = vset.pattern.permute.xlu0 0
  %71 = vperm.xlu0 %70, %v61
  %v72 = vpop.permute.xlu0 %71
  %75 = vset.pattern.permute.xlu0 0
  %76 = vperm.xlu0 %75, %v62
  %v77 = vpop.permute.xlu0 %76
  %80 = vset.pattern.permute.xlu0 0
  %81 = vperm.xlu0 %80, %v63
  %v82 = vpop.permute.xlu0 %81
  %v84 = vadd.f32 %v56, %v67
  %v85 = vadd.f32 %v57, %v72
  %v86 = vadd.f32 %v58, %v77
  %v87 = vadd.f32 %v59, %v82
  %v88 = vmax.f32 %v84, 0.0
  %v89 = vmax.f32 %v85, 0.0
  %v90 = vmax.f32 %v86, 0.0
  %v91 = vmax.f32 %v87, 0.0
  %v92 = vld [vmem:[%s3] sm:$0xf]
  %v93 = vld [vmem:[%s3 + $0x4] sm:$0xf]
  %v94 = vld [vmem:[%s3 + $0x8] sm:$0xf]
  %v95 = vld [vmem:[%s3 + $0xc] sm:$0xf]
  %v96 = vld [vmem:[%s4] sm:$0xff]
  %v97 = vld [vmem:[%s4 + $0x8] sm:$0xff]
  %v98 = vld [vmem:[%s4 + $0x10] sm:$0xff]
  %v99 = vld [vmem:[%s4 + $0x18] sm:$0xff]
  %v100 = vpack.c.bf16 %v89, %v88
  %v101 = vpack.c.bf16 %v91, %v90
  %103 = vset.pattern.permute.xlu0 0
  %104 = vperm.xlu0 %103, %v96
  %v105 = vpop.permute.xlu0 %104
  %108 = vset.pattern.permute.xlu0 0
  %109 = vperm.xlu0 %108, %v97
  %v110 = vpop.permute.xlu0 %109
  %113 = vset.pattern.permute.xlu0 0
  %114 = vperm.xlu0 %113, %v98
  %v115 = vpop.permute.xlu0 %114
  %118 = vset.pattern.permute.xlu0 0
  %119 = vperm.xlu0 %118, %v99
  %v120 = vpop.permute.xlu0 %119
  %v126 = vunpack.c.l.b16 %v92
  %v127 = vunpack.c.l.b16 %v93
  %v128 = vunpack.c.l.b16 %v94
  %v129 = vunpack.c.l.b16 %v95
  %v130 = vpack.c.b16 %v127, %v126
  %v131 = vpack.c.b16 %v129, %v128
  %vm132 = vcmask 261120
  %v134 = vsel %vm132, %v130, 0
  %v137 = vsel %vm132, %v131, 0
  %139 = vmatpush.bf16.msra.mxu0 0
  %140 = vmatpush.bf16.msra.mxu0 0
  %141 = vmatpush.bf16.msra.mxu0 0
  %142 = vmatpush.bf16.msra.mxu0 0
  %143 = vmatpush.bf16.msra.mxu0 0
  %144 = vmatpush.bf16.msra.mxu0 0
  %145 = vmatpush.bf16.msra.mxu0 %v101
  %146 = vmatpush.bf16.msra.mxu0 %v100
  %147 = vmatmul.bf16.gmra.mxu0 %v134
  %v148 = vpop.f32.mrf.mxu0
  %v149 = vadd.f32 %v105, %v148
  %v150 = vpop.f32.mrf.mxu0
  %v151 = vadd.f32 %v110, %v150
  %152 = vmatmul.bf16.gmra.mxu0 %v137
  %v153 = vpop.f32.mrf.mxu0
  %v154 = vadd.f32 %v115, %v153
  %v155 = vpop.f32.mrf.mxu0
  %v156 = vadd.f32 %v120, %v155
  %157 = vdwg.mxu0
  %v158 = vmax.f32 %v149, 0.0
  %v159 = vmax.f32 %v151, 0.0
  %v160 = vmax.f32 %v154, 0.0
  %v161 = vmax.f32 %v156, 0.0
  %v162 = vld [vmem:[%s5] sm:$0xff]
  %v163 = vld [vmem:[%s5 + $0x8] sm:$0xff]
  %v164 = vld [vmem:[%s5 + $0x10] sm:$0xff]
  %v165 = vld [vmem:[%s5 + $0x18] sm:$0xff]
  %167 = vset.pattern.permute.xlu0 0
  %168 = vperm.xlu0 %167, %v162
  %v169 = vpop.permute.xlu0 %168
  %172 = vset.pattern.permute.xlu0 0
  %173 = vperm.xlu0 %172, %v163
  %v174 = vpop.permute.xlu0 %173
  %177 = vset.pattern.permute.xlu0 0
  %178 = vperm.xlu0 %177, %v164
  %v179 = vpop.permute.xlu0 %178
  %182 = vset.pattern.permute.xlu0 0
  %183 = vperm.xlu0 %182, %v165
  %v184 = vpop.permute.xlu0 %183
  %v186 = vmul.f32 %v158, %v169
  %v187 = vmul.f32 %v159, %v174
  %v188 = vmul.f32 %v160, %v179
  %v189 = vmul.f32 %v161, %v184
  %v190 = vadd.f32 %v186, %v187
  %v191 = vadd.f32 %v190, %v188
  %v192 = vadd.f32 %v191, %v189
  %v193 = vrot.slane %v192, 4
  %v194 = vadd.f32 %v192, %v193
  %v195 = vrot.slane %v194, 2
  %v196 = vadd.f32 %v194, %v195
  %v197 = vrot.slane %v196, 1
  %v198 = vadd.f32 %v196, %v197
  %s199 = sld [smem:[#allocation2]]
  %v200 = vstv %s199
  %v201 = vadd.f32 %v198, %v200
  %v202 = vxor.u32 %v201, 2147483648
  %v203 = vmul.f32 %v202, 1.442695
  %v204 = vpow.pop %v203
  %v205 = vadd.f32 %v204, 1.0
  %v206 = vrcp.pop %v205
  %v207 = vmul.f32 %v205, %v206
  %v208 = vsub.f32 1.0, %v207
  %v209 = vmul.f32 %v206, %v208
  %v210 = vadd.f32 %v206, %v209
  %vm211 = vweird.f32 %v205
  %vm212 = vweird.f32 %v206
  %vm213 = vmor %vm211, %vm212
  %v214 = vsel %vm213, %v206, %v210
  %v215 = vand.u32 2147483647, %v205
  %vm216 = vcmp.eq.f32.partialorder %v215, 8.507059e+37
  %v217 = vand.u32 %v205, 2147483648
  %v218 = vor.u32 1.1754944e-38, %v217
  %v219 = vsel %vm216, %v218, %v214
  %v220 = vmul.f32 1.0, %v219
  %221 = vst [vmem:[%s7] sm:$0x1] %v220
  // Predicated region
  $region30: #{meta_forward.1} parent=0 // pred_check
    _
  $region31: #{meta_forward.1} parent=0 // pred_check_branch
    %223 = sbr.rel (0) target = $region33
  $region32: #{meta_forward.1} parent=0 // pred_region
    _
  $region33: #{meta_forward.1} parent=0 // pred_fallthru
    _
  // Predicated region
  $region34: #{meta_forward.1} parent=0 // pred_check
    _
  $region35: #{meta_forward.1} parent=0 // pred_check_branch
    %225 = sbr.rel (0) target = $region37
  $region36: #{meta_forward.1} parent=0 // pred_region
    _
  $region37: #{meta_forward.1} parent=0 // pred_fallthru
    _

</llo_original>
